<compile_context>
chip_gen: v5e
topology: v5e:2x2
jax: 0.10.0
libtpu: 0.0.40
codegen_flags: <defaults>
</compile_context>

<pallas_src>
import functools

import jax
import jax.numpy as jnp
from jax.experimental import pallas as pl
from jax.experimental.pallas import tpu as pltpu


def _patch_embed_matmul_kernel(x_ref, w_ref, b_ref, o_ref):
    # x_ref: (TM, K) streamed patch rows
    # w_ref: (K, E)  VMEM-resident flattened conv weight ((c, ph, pw) along K)
    # b_ref: (1, E)  VMEM-resident conv bias
    # o_ref: (TM, E)
    acc = jnp.dot(x_ref[...], w_ref[...], preferred_element_type=jnp.float32)
    o_ref[...] = (acc + b_ref[...]).astype(o_ref.dtype)


def prepare_patch_embedding_params(weight, bias):
    """One-time re-layout of PyTorch Conv2d params.

    weight: (E, C, P, P) -> (K, E) with K ordered (c, ph, pw)
    bias:   (E,)         -> (1, E)
    """
    E = weight.shape[0]
    K = weight.shape[1] * weight.shape[2] * weight.shape[3]
    w2 = jnp.transpose(weight.reshape(E, K))  # (K, E), lane-contiguous RHS
    b2 = bias.reshape(1, E)
    return w2, b2


@functools.partial(jax.jit, static_argnames=("patch_size", "tm"))
def patch_embedding(x, w2, b2, *, patch_size, tm=256):
    """x: (B, C, H, W) NCHW; w2: (C*P*P, E); b2: (1, E).
    Returns (B, n_patches, E), matching PatchEmbedding.forward."""
    B, C, H, W = x.shape
    P = patch_size
    nH, nW = H // P, W // P
    n_patches = nH * nW
    K, E = w2.shape

    # --- glue: patchify, flatten each patch in (c, ph, pw) order ----------
    # (B, C, nH, P, nW, P) -> (B, nH, nW, C, P, P) -> (B*n_patches, K)
    # TODO(synk): fuse this patchify gather into the kernel (in-kernel reorder
    # of a (C, P, W) row-strip per grid step) to remove one HBM round-trip of
    # the activations.
    xp = x.reshape(B, C, nH, P, nW, P)
    xp = jnp.transpose(xp, (0, 2, 4, 1, 3, 5)).reshape(B * n_patches, K)

    M = B * n_patches
    # Tile M; keep TM a multiple of 8 (sublane) and <= M (small-shape demo).
    TM = max(8, (min(tm, M) // 8) * 8)
    n_blocks = pl.cdiv(M, TM)
    Mp = n_blocks * TM
    if Mp != M:
        xp = jnp.pad(xp, ((0, Mp - M), (0, 0)))

    itemsize = jnp.dtype(xp.dtype).itemsize
    out = pl.pallas_call(
        _patch_embed_matmul_kernel,
        out_shape=jax.ShapeDtypeStruct((Mp, E), x.dtype),
        grid_spec=pltpu.PrefetchScalarGridSpec(
            num_scalar_prefetch=0,
            grid=(n_blocks,),
            in_specs=[
                pl.BlockSpec((TM, K), lambda i: (i, 0)),   # streamed activations
                pl.BlockSpec((K, E), lambda i: (0, 0)),    # resident weight
                pl.BlockSpec((1, E), lambda i: (0, 0)),    # resident bias
            ],
            out_specs=pl.BlockSpec((TM, E), lambda i: (i, 0)),
        ),
        compiler_params=pltpu.CompilerParams(
            dimension_semantics=("parallel",)),
        cost_estimate=pl.CostEstimate(
            flops=2 * Mp * K * E,
            transcendentals=0,
            bytes_accessed=itemsize * (Mp * K + K * E + Mp * E),
        ),
    )(xp, w2, b2)

    if Mp != M:
        out = out[:M]

    # (B*n_patches, E) -> (B, n_patches, E)  == proj(x).flatten(2).transpose(1,2)
    return out.reshape(B, n_patches, E)


if __name__ == "__main__":
    # Small shapes consistent with the module: img=16, patch=4, in_chans=4,
    # embed_dim=32 -> n_patches = (16//4)**2 = 16.
    B, C, IMG, P, E = 2, 4, 16, 4, 32

    key = jax.random.PRNGKey(0)
    kx, kw, kb = jax.random.split(key, 3)

    x = jax.random.normal(kx, (B, C, IMG, IMG), dtype=jnp.float32)
    # Deterministic synthetic Conv2d parameters (PyTorch layout (E, C, P, P)).
    weight = 0.02 * jax.random.normal(kw, (E, C, P, P), dtype=jnp.float32)
    bias = 0.01 * jax.random.normal(kb, (E,), dtype=jnp.float32)

    # One-time param re-layout (done at init, not per forward call).
    w2, b2 = prepare_patch_embedding_params(weight, bias)

    out = patch_embedding(x, w2, b2, patch_size=P)
    out = jax.block_until_ready(out)

    # Cross-check against a pure-JAX reference (strided conv == patch matmul).
    ref = jax.lax.conv_general_dilated(
        x, weight, window_strides=(P, P), padding="VALID",
        dimension_numbers=("NCHW", "OIHW", "NCHW"),
    ) + bias.reshape(1, E, 1, 1)
    ref = ref.reshape(B, E, -1).transpose(0, 2, 1)

    assert out.shape == (B, (IMG // P) ** 2, E)
    assert jnp.allclose(out, ref, atol=1e-5, rtol=1e-5)

    print("KERNEL_OK")
</pallas_src>

<mosaic_0001>
module attributes {stable_mosaic.version = 11 : i64} {
  func.func @_patch_embed_matmul_kernel(%arg0: i32, %arg1: memref<32x64xf32, #tpu.memory_space<vmem>>, %arg2: memref<64x32xf32, #tpu.memory_space<vmem>>, %arg3: memref<1x32xf32, #tpu.memory_space<vmem>>, %arg4: memref<32x32xf32, #tpu.memory_space<vmem>>) attributes {dimension_semantics = [#tpu.dimension_semantics<parallel>], iteration_bounds = array<i64: 1>, scalar_prefetch = 0 : i64, scratch_operands = 0 : i64, tpu.core_type = #tpu.core_type<tc>, window_params = [{transform_indices = @transform_0, window_bounds = array<i64: 32, 64>}, {pipeline_mode = #tpu.pipeline_mode<synchronous>, transform_indices = @transform_1, window_bounds = array<i64: 64, 32>}, {pipeline_mode = #tpu.pipeline_mode<synchronous>, transform_indices = @transform_2, window_bounds = array<i64: 1, 32>}, {transform_indices = @transform_3, window_bounds = array<i64: 32, 32>}]} {
    %c0 = arith.constant 0 : index
    %c0_0 = arith.constant 0 : index
    %0 = vector.load %arg1[%c0, %c0_0] : memref<32x64xf32, #tpu.memory_space<vmem>>, vector<32x64xf32>
    %c0_1 = arith.constant 0 : index
    %c0_2 = arith.constant 0 : index
    %1 = vector.load %arg2[%c0_1, %c0_2] : memref<64x32xf32, #tpu.memory_space<vmem>>, vector<64x32xf32>
    %cst = arith.constant dense<0.000000e+00> : vector<32x32xf32>
    %2 = tpu.matmul %0, %1, %cst {dimension_numbers = #tpu.dot_dimension_numbers<[1], [0], [0], [1], [0, 0, 1, 1], [], []>} : vector<32x64xf32>, vector<64x32xf32>, vector<32x32xf32> -> vector<32x32xf32>
    %c0_3 = arith.constant 0 : index
    %c0_4 = arith.constant 0 : index
    %3 = vector.load %arg3[%c0_3, %c0_4] : memref<1x32xf32, #tpu.memory_space<vmem>>, vector<1x32xf32>
    %4 = vector.broadcast %3 : vector<1x32xf32> to vector<32x32xf32>
    %5 = arith.addf %2, %4 : vector<32x32xf32>
    %c0_5 = arith.constant 0 : index
    %c0_6 = arith.constant 0 : index
    %6 = vector.load %arg4[%c0_5, %c0_6] : memref<32x32xf32, #tpu.memory_space<vmem>>, vector<32x32xf32>
    tpu.vector_store %arg4[%c0_5, %c0_6], %5 {strides = array<i32>} : memref<32x32xf32, #tpu.memory_space<vmem>>, vector<32x32xf32>,
    return
  }
  func.func @transform_0(%arg0: i32) -> (i32, i32) {
    %c0_i32 = arith.constant 0 : i32
    %c0_i32_0 = arith.constant 0 : i32
    return %arg0, %c0_i32 : i32, i32
  }
  func.func @transform_1(%arg0: i32) -> (i32, i32) {
    %c0_i32 = arith.constant 0 : i32
    %c0_i32_0 = arith.constant 0 : i32
    %c0_i32_1 = arith.constant 0 : i32
    return %c0_i32, %c0_i32_0 : i32, i32
  }
  func.func @transform_2(%arg0: i32) -> (i32, i32) {
    %c0_i32 = arith.constant 0 : i32
    %c0_i32_0 = arith.constant 0 : i32
    %c0_i32_1 = arith.constant 0 : i32
    return %c0_i32, %c0_i32_0 : i32, i32
  }
  func.func @transform_3(%arg0: i32) -> (i32, i32) {
    %c0_i32 = arith.constant 0 : i32
    %c0_i32_0 = arith.constant 0 : i32
    return %arg0, %c0_i32 : i32, i32
  }
}

</mosaic_0001>

<llo_original>
// kernel: patch_embedding.1
$region0: #{patch_embedding.1}
  #allocation0 [shape = 'u32[]', space=smem, size = 0x4, offset = 0x4, fixed_abs, tag = 'smem constant byte address 0x4 - core index']
  #allocation1 [shape = 'u32[72,128]{1,0:T(1,128)}', space=vmem, size = 0x9000, scoped, tag = 'internal scratch']
  %s0 = inlined_call_operand.vmem [shape: f32[32,64], index: 0, kind: input, shape index: {}]
  %s1 = inlined_call_operand.vmem [shape: f32[64,32], index: 1, kind: input, shape index: {}]
  %s2 = inlined_call_operand.vmem [shape: f32[1,32], index: 2, kind: input, shape index: {}]
  %s3 = inlined_call_operand.hbm [shape: f32[32,32], index: 3, kind: output, shape index: {}]
  %s4 = sld [smem:[#allocation0]]
  $region22: #{patch_embedding.1} parent=0
    _
  %s6 = ssub.s32 1, %s4
  %s7 = scalar_select 0, %s6, %s4
  $region1: #{patch_embedding.1} parent=0
    #allocation2 [shape = 'u8[16384]{0}', space=vmem, size = 0x4000, scoped, tag = 'output window, operand 0, single buffered']
    #allocation3 [shape = 's32[1]{0}', space=sflag, size = 0x4, scoped, tag = 'scoped memory for patch_embedding.1']
    %8 = vsyncpa [#allocation3], 0
    // Predicated region
    $region2: #{patch_embedding.1} parent=1 // pred_check
      _
    $region3: #{patch_embedding.1} parent=1 // pred_check_branch
      %10 = sbr.rel (0) target = $region5
    $region4: #{patch_embedding.1} parent=1 // pred_region
      _
    $region5: #{patch_embedding.1} parent=1 // pred_fallthru
      _
    // Predicated region
    $region6: #{patch_embedding.1} parent=1 // pred_check
      _
    $region7: #{patch_embedding.1} parent=1 // pred_check_branch
      %12 = sbr.rel (0) target = $region9
    $region8: #{patch_embedding.1} parent=1 // pred_region
      _
    $region9: #{patch_embedding.1} parent=1 // pred_fallthru
      _
    // Predicated region
    $region10: #{patch_embedding.1} parent=1 // pred_check
      _
    $region11: #{patch_embedding.1} parent=1 // pred_check_branch
      %14 = sbr.rel (0) target = $region13
    $region12: #{patch_embedding.1} parent=1 // pred_region
      _
    $region13: #{patch_embedding.1} parent=1 // pred_fallthru
      _
    %v15 = vld [vmem:[%s0] sm:$0xff]
    %v16 = vld [vmem:[%s0 + $0x8] sm:$0xff]
    %v17 = vld [vmem:[%s0 + $0x10] sm:$0xff]
    %v18 = vld [vmem:[%s0 + $0x18] sm:$0xff]
    %v19 = vld [vmem:[%s1] sm:$0xff]
    %v20 = vld [vmem:[%s1 + $0x8] sm:$0xff]
    %v21 = vld [vmem:[%s1 + $0x10] sm:$0xff]
    %v22 = vld [vmem:[%s1 + $0x18] sm:$0xff]
    %v23 = vld [vmem:[%s1 + $0x20] sm:$0xff]
    %v24 = vld [vmem:[%s1 + $0x28] sm:$0xff]
    %v25 = vld [vmem:[%s1 + $0x30] sm:$0xff]
    %v26 = vld [vmem:[%s1 + $0x38] sm:$0xff]
    %v27 = vld [vmem:[%s2] sm:$0x1]
    %v29 = vperm.slane %v27, 0
    %vm31 = vcmask 523264
    %v33 = vsel %vm31, %v15, 0
    %v36 = vsel %vm31, %v16, 0
    %v39 = vsel %vm31, %v17, 0
    %v42 = vsel %vm31, %v18, 0
    %44 = vmatpush.msra.mxu0 0.0
    %45 = vmatpush.msra.mxu0 0.0
    %46 = vmatpush.msra.mxu0 0.0
    %47 = vmatpush.msra.mxu0 0.0
    %48 = vmatpush.msra.mxu0 0.0
    %49 = vmatpush.msra.mxu0 0.0
    %50 = vmatpush.msra.mxu0 0.0
    %51 = vmatpush.msra.mxu0 0.0
    %52 = vmatpush.msra.mxu0 %v26
    %53 = vmatpush.msra.mxu0 %v25
    %54 = vmatpush.msra.mxu0 %v24
    %55 = vmatpush.msra.mxu0 %v23
    %56 = vmatpush.msra.mxu0 %v22
    %57 = vmatpush.msra.mxu0 %v21
    %58 = vmatpush.msra.mxu0 %v20
    %59 = vmatpush.msra.mxu0 %v19
    %60 = vmatmul.f32.gmra.mxu0 %v33
    %v61 = vpop.f32.mrf.mxu0
    %v62 = vadd.f32 %v29, %v61
    %63 = vmatmul.f32.gmra.mxu0 %v36
    %v64 = vpop.f32.mrf.mxu0
    %v65 = vadd.f32 %v29, %v64
    %66 = vmatmul.f32.gmra.mxu0 %v39
    %v67 = vpop.f32.mrf.mxu0
    %v68 = vadd.f32 %v29, %v67
    %69 = vmatmul.f32.gmra.mxu0 %v42
    %v70 = vpop.f32.mrf.mxu0
    %v71 = vadd.f32 %v29, %v70
    %72 = vdwg.mxu0
    %vm73 = vcmask 261120
    %74 = vst.msk [vmem:[#allocation2] sm:$0xff] %vm73, %v62
    %75 = vst.msk [vmem:[#allocation2 + $0x8] sm:$0xff] %vm73, %v65
    %76 = vst.msk [vmem:[#allocation2 + $0x10] sm:$0xff] %vm73, %v68
    %77 = vst.msk [vmem:[#allocation2 + $0x18] sm:$0xff] %vm73, %v71
    // Predicated region
    $region14: #{patch_embedding.1} parent=1 // pred_check
      _
    $region15: #{patch_embedding.1} parent=1 // pred_check_branch
      %79 = sbr.rel (0) target = $region17
    $region16: #{patch_embedding.1} parent=1 // pred_region
      %81 = vsyncadd [#allocation3], 0
      %s82 = sshll.u32 [#allocation2], 4
      %s83 = int_to_ptr.vmem [resolvable:$true] %s82
      %s84 = sshll.u32 %s3, 4
      %s85 = int_to_ptr.hbm [resolvable:$true] %s84
      %90 = dma.vmem_to_hbm [thread:$0]  %s83, 512, %s85, [#allocation3], 128, 128, 8
    $region17: #{patch_embedding.1} parent=1 // pred_fallthru
      _
    // Predicated region
    $region18: #{patch_embedding.1} parent=1 // pred_check
      _
    $region19: #{patch_embedding.1} parent=1 // pred_check_branch
      %92 = sbr.rel (0) target = $region21
    $region20: #{patch_embedding.1} parent=1 // pred_region
      %94 = dma.done [#allocation3], 512
    $region21: #{patch_embedding.1} parent=1 // pred_fallthru
      _
    %95 = vsyncpa [#allocation3], 1

</llo_original>
